<compile_context>
chip_gen: v7x
topology: tpu7x:2x2x1
jax: 0.10.0
libtpu: 0.0.40
codegen_flags: <defaults>
</compile_context>

<pallas_src>
import functools
import math

import jax
import jax.numpy as jnp
from jax import lax
from jax.experimental import pallas as pl
from jax.experimental.pallas import tpu as pltpu

_BIG_IDX = 2 ** 30  # sentinel "invalid" neighbor index (fits int32)


def _round_up(a, b):
    return (a + b - 1) // b * b


def _vmem_capacity_bytes():
    """Physical VMEM (128 MiB v5e/v6e, 64 MiB per-TC v7x); conservative fallback."""
    try:
        return int(pltpu.get_tpu_info().vmem_capacity_bytes)
    except Exception:
        return 64 << 20


# ---------------------------------------------------------------------------
# Pallas kernel 1: fused kNN = pairwise squared distances + streaming k-best.
#   grid = (B, S_tiles, N_tiles), N innermost and "arbitrary".
#   Running best distances live in VMEM scratch; running best indices live in
#   the resident output block (same block index across the N axis).
# ---------------------------------------------------------------------------
def _knn_kernel(q_ref, pt_ref, nbr_ref, bestd_ref, *, n_valid):
    n_i = pl.program_id(2)
    tile_s, k = bestd_ref.shape

    @pl.when(n_i == 0)
    def _init():
        bestd_ref[...] = jnp.full((tile_s, k), jnp.inf, dtype=jnp.float32)
        nbr_ref[0] = jnp.full((tile_s, k), _BIG_IDX, dtype=jnp.int32)

    q = q_ref[0]                              # [tile_s, 3]  (S on sublanes)
    pt = pt_ref[0]                            # [3, tn]      (N dense on lanes)
    d0 = q[:, 0:1] - pt[0:1, :]               # VPU broadcast-sub
    d1 = q[:, 1:2] - pt[1:2, :]
    d2 = q[:, 2:3] - pt[2:3, :]
    d = d0 * d0 + d1 * d1 + d2 * d2           # [tile_s, tn]

    tn = pt.shape[1]
    col = lax.broadcasted_iota(jnp.int32, d.shape, 1) + n_i * tn
    dw = jnp.where(col < n_valid, d, jnp.inf)  # mask N-padding tail

    bd = bestd_ref[...]                        # old best distances  [tile_s, k]
    bi = nbr_ref[0]                            # old best indices    [tile_s, k]

    slot = lax.broadcasted_iota(jnp.int32, (tile_s, k), 1)
    newd = jnp.full((tile_s, k), jnp.inf, dtype=jnp.float32)
    newi = jnp.full((tile_s, k), _BIG_IDX, dtype=jnp.int32)

    # k selection rounds; every op is a lane-reduce / select (no concat needed).
    for j in range(k):
        mold = jnp.min(bd, axis=1, keepdims=True)                       # [tile_s,1]
        iold = jnp.min(jnp.where(bd <= mold, bi, _BIG_IDX), axis=1, keepdims=True)
        mnew = jnp.min(dw, axis=1, keepdims=True)
        inew = jnp.min(jnp.where(dw <= mnew, col, _BIG_IDX), axis=1, keepdims=True)
        take_old = mold <= mnew
        sd = jnp.where(take_old, mold, mnew)
        si = jnp.where(take_old, iold, inew)
        newd = jnp.where(slot == j, sd, newd)
        newi = jnp.where(slot == j, si, newi)
        bd = jnp.where(take_old & (bi == iold), jnp.inf, bd)            # knock out
        dw = jnp.where((~take_old) & (col == inew), jnp.inf, dw)

    bestd_ref[...] = newd
    nbr_ref[0] = newi


def knn_indices(pos_c_pad, pos_t_pad, *, k, n_valid, tile_s, tn):
    """pos_c_pad: [B, S_pad, 3] centers, pos_t_pad: [B, 3, N_pad] points.
    Returns [B, S_pad, k] int32 per-cloud neighbor indices."""
    B, S_pad, _ = pos_c_pad.shape
    N_pad = pos_t_pad.shape[2]
    assert S_pad % tile_s == 0 and tile_s % 8 == 0
    assert N_pad % tn == 0 and tn % 128 == 0
    assert k <= n_valid and k <= tn
    kernel = functools.partial(_knn_kernel, n_valid=n_valid)
    return pl.pallas_call(
        kernel,
        out_shape=jax.ShapeDtypeStruct((B, S_pad, k), jnp.int32),
        grid_spec=pltpu.PrefetchScalarGridSpec(
            num_scalar_prefetch=0,
            grid=(B, S_pad // tile_s, N_pad // tn),
            in_specs=[pl.BlockSpec((1, tile_s, 3), lambda b, s, n: (b, s, 0)),
                      pl.BlockSpec((1, 3, tn), lambda b, s, n: (b, 0, n))],
            out_specs=pl.BlockSpec((1, tile_s, k), lambda b, s, n: (b, s, 0)),
            scratch_shapes=[pltpu.VMEM((tile_s, k), jnp.float32)],
        ),
        compiler_params=pltpu.CompilerParams(
            dimension_semantics=("parallel", "parallel", "arbitrary")),
    )(pos_c_pad, pos_t_pad)


# ---------------------------------------------------------------------------
# Pallas kernel 2: PointNetConv message MLP + max aggregation over neighbors.
#   feats laid out [K, M, F_in] bf16.  First matmul is fused over all K slabs
#   ([K*tile_m, F] @ [F, H], f32 accumulate); second matmul runs per K-slab
#   with the neighbor max folded in so only [tile_m, C] stays live.
# ---------------------------------------------------------------------------
def _pointnet_conv_kernel(feats_ref, w1_ref, b1_ref, w2_ref, b2_ref, out_ref):
    K, tile_m, F = feats_ref.shape
    # Leading-dim merge is sublane-tile aligned (tile_m % 16 == 0 for bf16).
    f = feats_ref[...].reshape(K * tile_m, F)                        # bf16
    h = jnp.dot(f, w1_ref[...], preferred_element_type=jnp.float32) + b1_ref[...]
    h = jnp.maximum(h, 0.0).astype(jnp.bfloat16)                     # [K*tile_m, H]

    w2 = w2_ref[...]
    acc = jnp.dot(h[0:tile_m, :], w2, preferred_element_type=jnp.float32)
    for kk in range(1, K):
        y = jnp.dot(h[kk * tile_m:(kk + 1) * tile_m, :], w2,
                    preferred_element_type=jnp.float32)
        acc = jnp.maximum(acc, y)                                    # [tile_m, C]
    # bias + ReLU commute with the neighbor max (both monotone, bias shared).
    out_ref[...] = jnp.maximum(acc + b2_ref[...], 0.0).astype(out_ref.dtype)


def _pick_conv_tile_m(M, K, F, H, C, budget_bytes):
    m_cap = _round_up(M, 16)
    for cand in (1024, 512, 256, 128, 64, 32, 16):
        if cand > m_cap:
            continue
        feats_bytes = 2 * K * cand * F * 2          # bf16 block, double-buffered
        h_bytes = K * cand * H * (4 + 2)            # f32 activations + bf16 copy
        out_bytes = 2 * cand * C * 4                # acc + output block
        if feats_bytes + h_bytes + out_bytes <= budget_bytes:
            return cand
    return 16


def pointnet_conv_max(feats_kmf, w1, b1, w2, b2, *, tile_m, vmem_limit_bytes):
    """feats_kmf: [K, M_pad, F_in] bf16 -> [M_pad, C_out] f32."""
    K, M_pad, F = feats_kmf.shape
    H, C_out = w1.shape[1], w2.shape[1]
    assert M_pad % tile_m == 0 and tile_m % 16 == 0
    return pl.pallas_call(
        _pointnet_conv_kernel,
        out_shape=jax.ShapeDtypeStruct((M_pad, C_out), jnp.float32),
        grid_spec=pltpu.PrefetchScalarGridSpec(
            num_scalar_prefetch=0,
            grid=(M_pad // tile_m,),
            in_specs=[
                pl.BlockSpec((K, tile_m, F), lambda i: (0, i, 0)),
                pl.BlockSpec((F, H), lambda i: (0, 0)),
                pl.BlockSpec((1, H), lambda i: (0, 0)),
                pl.BlockSpec((H, C_out), lambda i: (0, 0)),
                pl.BlockSpec((1, C_out), lambda i: (0, 0)),
            ],
            out_specs=pl.BlockSpec((tile_m, C_out), lambda i: (i, 0)),
        ),
        compiler_params=pltpu.CompilerParams(
            dimension_semantics=("parallel",),
            vmem_limit_bytes=int(vmem_limit_bytes)),
    )(feats_kmf, w1.astype(jnp.bfloat16), b1, w2.astype(jnp.bfloat16), b2)


# ---------------------------------------------------------------------------
# JAX glue: farthest-point sampling (inherently sequential).
# ---------------------------------------------------------------------------
def fps_dense(pos_b, num_samples):
    """pos_b: [N, 3] -> [num_samples] int32 indices (deterministic start at 0)."""
    N = pos_b.shape[0]
    idx0 = jnp.zeros((num_samples,), jnp.int32)
    dist0 = jnp.full((N,), jnp.inf, dtype=jnp.float32)

    def body(i, state):
        idx, dist = state
        last = pos_b[idx[i - 1]]
        d = jnp.sum((pos_b - last) ** 2, axis=-1)
        dist = jnp.minimum(dist, d)
        nxt = jnp.argmax(dist).astype(jnp.int32)
        return idx.at[i].set(nxt), dist

    idx, _ = lax.fori_loop(1, num_samples, body, (idx0, dist0))
    return idx


def _pick_tile_s(S):
    s8 = _round_up(S, 8)
    if s8 <= 256:
        return s8
    best_cand, best_waste = 256, None
    for cand in (256, 128, 64):
        waste = _round_up(S, cand) - S
        if best_waste is None or waste < best_waste:
            best_cand, best_waste = cand, waste
    return best_cand


def sa_module_forward(x, pos, batch, params, *, B, ratio, k):
    N_total, C_in = x.shape
    N = N_total // B
    S = int(math.ceil(N * ratio))           # torch_geometric fps samples ceil(ratio*N)
    assert k <= N
    posb = pos.reshape(B, N, 3)

    # 1) FPS per cloud (sequential -> plain JAX).
    idx_local = jax.vmap(fps_dense, in_axes=(0, None))(posb, S)        # [B, S]
    pos_c = jnp.take_along_axis(posb, idx_local[..., None], axis=1)    # [B, S, 3]

    # 2) fused kNN: distances + streaming k-best in one Pallas kernel.
    tn = min(512, _round_up(N, 128))
    N_pad = _round_up(N, tn)
    tile_s = _pick_tile_s(S)
    S_pad = _round_up(S, tile_s)
    pos_t = jnp.transpose(posb, (0, 2, 1))                             # [B, 3, N]
    if N_pad != N:
        pos_t = jnp.pad(pos_t, ((0, 0), (0, 0), (0, N_pad - N)))
    pos_c_pad = pos_c if S_pad == S else jnp.pad(
        pos_c, ((0, 0), (0, S_pad - S), (0, 0)))
    nbr = knn_indices(pos_c_pad, pos_t, k=k, n_valid=N, tile_s=tile_s, tn=tn)
    nbr = jnp.clip(nbr[:, :S, :], 0, N - 1)                            # [B, S, k]

    # 3) gather neighbor features directly into the kernel's [k, M, F] bf16 layout
    #    (no separate transpose/pad passes over the K-expanded edge tensor).
    M = B * S
    F_in = C_in + 3
    offs = (jnp.arange(B, dtype=jnp.int32) * N)[:, None, None]
    nbr_km = jnp.transpose(nbr + offs, (2, 0, 1)).reshape(k, M)        # [k, M]
    x_j = jnp.take(x, nbr_km, axis=0)                                  # [k, M, C_in]
    pos_j = jnp.take(pos, nbr_km, axis=0)                              # [k, M, 3]
    rel = pos_j - pos_c.reshape(1, M, 3)
    feats = jnp.concatenate([x_j, rel], axis=-1).astype(jnp.bfloat16)  # [k, M, F]

    # 4) PointNetConv (fused bf16 MLP + max aggregation) in Pallas.
    w1, b1, w2, b2 = params
    H, C_out = w1.shape[1], w2.shape[1]
    vmem_cap = _vmem_capacity_bytes()
    vmem_limit = int(min(max(vmem_cap * 3 // 4, 32 << 20), 100 << 20))
    tile_m = _pick_conv_tile_m(M, k, F_in, H, C_out, vmem_limit // 2)
    M_pad = _round_up(M, tile_m)
    if M_pad != M:
        feats = jnp.pad(feats, ((0, 0), (0, M_pad - M), (0, 0)))

    x_out = pointnet_conv_max(feats, w1, b1, w2, b2,
                              tile_m=tile_m, vmem_limit_bytes=vmem_limit)
    if M_pad != M:
        x_out = x_out[:M]

    pos_out = pos_c.reshape(M, 3)
    batch_out = jnp.repeat(jnp.arange(B, dtype=batch.dtype), S)
    return x_out, pos_out, batch_out


# ---------------------------------------------------------------------------
if __name__ == "__main__":
    key = jax.random.PRNGKey(0)
    B, N, C_in = 2, 16, 4
    ratio, k = 0.5, 4
    hidden, C_out = 32, 32

    k_pos, k_x, k_w1, k_w2 = jax.random.split(key, 4)
    pos = jax.random.normal(k_pos, (B * N, 3), dtype=jnp.float32)
    x = jax.random.normal(k_x, (B * N, C_in), dtype=jnp.float32)
    batch = jnp.repeat(jnp.arange(B, dtype=jnp.int32), N)

    # Deterministic MLP params for the PointNetConv local `nn`:
    #   Linear(C_in + 3 -> hidden) + ReLU + Linear(hidden -> C_out) + ReLU
    F_in = C_in + 3
    w1 = 0.1 * jax.random.normal(k_w1, (F_in, hidden), dtype=jnp.float32)
    b1 = jnp.zeros((1, hidden), dtype=jnp.float32)
    w2 = 0.1 * jax.random.normal(k_w2, (hidden, C_out), dtype=jnp.float32)
    b2 = jnp.zeros((1, C_out), dtype=jnp.float32)
    params = (w1, b1, w2, b2)

    x_out, pos_out, batch_out = sa_module_forward(
        x, pos, batch, params, B=B, ratio=ratio, k=k)
    jax.block_until_ready((x_out, pos_out, batch_out))

    S = math.ceil(N * ratio)
    assert x_out.shape == (B * S, C_out)
    assert pos_out.shape == (B * S, 3)
    assert batch_out.shape == (B * S,)
    assert bool(jnp.all(jnp.isfinite(x_out)))
    print("KERNEL_OK")
</pallas_src>

<mosaic_0001>
module attributes {stable_mosaic.version = 11 : i64} {
  func.func @_knn_kernel(%arg0: i32, %arg1: i32, %arg2: i32, %arg3: memref<1x8x3xf32, #tpu.memory_space<vmem>>, %arg4: memref<1x3x128xf32, #tpu.memory_space<vmem>>, %arg5: memref<1x8x4xi32, #tpu.memory_space<vmem>>, %arg6: memref<8x4xf32, #tpu.memory_space<vmem>>) attributes {dimension_semantics = [#tpu.dimension_semantics<parallel>, #tpu.dimension_semantics<parallel>, #tpu.dimension_semantics<arbitrary>], iteration_bounds = array<i64: 2, 1, 1>, scalar_prefetch = 0 : i64, scratch_operands = 1 : i64, tpu.core_type = #tpu.core_type<tc>, window_params = [{transform_indices = @transform_0, window_bounds = array<i64: 1, 8, 3>}, {transform_indices = @transform_1, window_bounds = array<i64: 1, 3, 128>}, {transform_indices = @transform_2, window_bounds = array<i64: 1, 8, 4>}]} {
    %c0_i32 = arith.constant 0 : i32
    %0 = arith.cmpi eq, %arg2, %c0_i32 : i32
    %1 = arith.extui %0 : i1 to i32
    %c0_i32_0 = arith.constant 0 : i32
    %2 = arith.cmpi ne, %1, %c0_i32_0 : i32
    scf.if %2 {
      %cst_55 = arith.constant 0x7F800000 : f32
      %200 = vector.broadcast %cst_55 : f32 to vector<8x4xf32>
      %c0_56 = arith.constant 0 : index
      %c0_57 = arith.constant 0 : index
      %201 = vector.load %arg6[%c0_56, %c0_57] : memref<8x4xf32, #tpu.memory_space<vmem>>, vector<8x4xf32>
      tpu.vector_store %arg6[%c0_56, %c0_57], %200 {strides = array<i32>} : memref<8x4xf32, #tpu.memory_space<vmem>>, vector<8x4xf32>,
      %c1073741824_i32_58 = arith.constant 1073741824 : i32
      %202 = vector.broadcast %c1073741824_i32_58 : i32 to vector<8x4xi32>
      %c0_59 = arith.constant 0 : index
      %c0_60 = arith.constant 0 : index
      %c0_61 = arith.constant 0 : index
      %203 = vector.load %arg5[%c0_59, %c0_60, %c0_61] : memref<1x8x4xi32, #tpu.memory_space<vmem>>, vector<1x8x4xi32>
      %204 = vector.shape_cast %203 : vector<1x8x4xi32> to vector<8x4xi32>
      %205 = vector.shape_cast %202 : vector<8x4xi32> to vector<1x8x4xi32>
      tpu.vector_store %arg5[%c0_59, %c0_60, %c0_61], %205 {strides = array<i32>} : memref<1x8x4xi32, #tpu.memory_space<vmem>>, vector<1x8x4xi32>,
    } else {
    }
    %c0 = arith.constant 0 : index
    %c0_1 = arith.constant 0 : index
    %c0_2 = arith.constant 0 : index
    %3 = vector.load %arg3[%c0, %c0_1, %c0_2] : memref<1x8x3xf32, #tpu.memory_space<vmem>>, vector<1x8x3xf32>
    %4 = vector.shape_cast %3 : vector<1x8x3xf32> to vector<8x3xf32>
    %c0_3 = arith.constant 0 : index
    %c0_4 = arith.constant 0 : index
    %c0_5 = arith.constant 0 : index
    %5 = vector.load %arg4[%c0_3, %c0_4, %c0_5] : memref<1x3x128xf32, #tpu.memory_space<vmem>>, vector<1x3x128xf32>
    %6 = vector.shape_cast %5 : vector<1x3x128xf32> to vector<3x128xf32>
    %7 = vector.extract_strided_slice %4 {offsets = [0, 0], sizes = [8, 1], strides = [1, 1]} : vector<8x3xf32> to vector<8x1xf32>
    %8 = vector.extract_strided_slice %6 {offsets = [0, 0], sizes = [1, 128], strides = [1, 1]} : vector<3x128xf32> to vector<1x128xf32>
    %9 = vector.broadcast %7 : vector<8x1xf32> to vector<8x128xf32>
    %10 = vector.broadcast %8 : vector<1x128xf32> to vector<8x128xf32>
    %11 = arith.subf %9, %10 : vector<8x128xf32>
    %12 = vector.extract_strided_slice %4 {offsets = [0, 1], sizes = [8, 1], strides = [1, 1]} : vector<8x3xf32> to vector<8x1xf32>
    %13 = vector.extract_strided_slice %6 {offsets = [1, 0], sizes = [1, 128], strides = [1, 1]} : vector<3x128xf32> to vector<1x128xf32>
    %14 = vector.broadcast %12 : vector<8x1xf32> to vector<8x128xf32>
    %15 = vector.broadcast %13 : vector<1x128xf32> to vector<8x128xf32>
    %16 = arith.subf %14, %15 : vector<8x128xf32>
    %17 = vector.extract_strided_slice %4 {offsets = [0, 2], sizes = [8, 1], strides = [1, 1]} : vector<8x3xf32> to vector<8x1xf32>
    %18 = vector.extract_strided_slice %6 {offsets = [2, 0], sizes = [1, 128], strides = [1, 1]} : vector<3x128xf32> to vector<1x128xf32>
    %19 = vector.broadcast %17 : vector<8x1xf32> to vector<8x128xf32>
    %20 = vector.broadcast %18 : vector<1x128xf32> to vector<8x128xf32>
    %21 = arith.subf %19, %20 : vector<8x128xf32>
    %22 = arith.mulf %11, %11 : vector<8x128xf32>
    %23 = arith.mulf %16, %16 : vector<8x128xf32>
    %24 = arith.addf %22, %23 : vector<8x128xf32>
    %25 = arith.mulf %21, %21 : vector<8x128xf32>
    %26 = arith.addf %24, %25 : vector<8x128xf32>
    %27 = tpu.iota {dimensions = array<i32: 1>} : vector<8x128xi32>
    %c128_i32 = arith.constant 128 : i32
    %28 = arith.muli %arg2, %c128_i32 : i32
    %29 = vector.broadcast %28 : i32 to vector<8x128xi32>
    %30 = arith.addi %27, %29 : vector<8x128xi32>
    %c16_i32 = arith.constant 16 : i32
    %31 = vector.broadcast %c16_i32 : i32 to vector<8x128xi32>
    %32 = arith.cmpi slt, %30, %31 : vector<8x128xi32>
    %cst = arith.constant 0x7F800000 : f32
    %33 = vector.broadcast %cst : f32 to vector<8x128xf32>
    %34 = arith.select %32, %26, %33 : vector<8x128xi1>, vector<8x128xf32>
    %c0_6 = arith.constant 0 : index
    %c0_7 = arith.constant 0 : index
    %35 = vector.load %arg6[%c0_6, %c0_7] : memref<8x4xf32, #tpu.memory_space<vmem>>, vector<8x4xf32>
    %c0_8 = arith.constant 0 : index
    %c0_9 = arith.constant 0 : index
    %c0_10 = arith.constant 0 : index
    %36 = vector.load %arg5[%c0_8, %c0_9, %c0_10] : memref<1x8x4xi32, #tpu.memory_space<vmem>>, vector<1x8x4xi32>
    %37 = vector.shape_cast %36 : vector<1x8x4xi32> to vector<8x4xi32>
    %38 = tpu.iota {dimensions = array<i32: 1>} : vector<8x4xi32>
    %cst_11 = arith.constant 0x7F800000 : f32
    %39 = vector.broadcast %cst_11 : f32 to vector<8x4xf32>
    %c1073741824_i32 = arith.constant 1073741824 : i32
    %40 = vector.broadcast %c1073741824_i32 : i32 to vector<8x4xi32>
    %cst_12 = arith.constant dense<0x7F800000> : vector<8xf32>
    %41 = vector.multi_reduction <minimumf>, %35, %cst_12 [1] : vector<8x4xf32> to vector<8xf32>
    %42 = vector.shape_cast %41 : vector<8xf32> to vector<8x1xf32>
    %43 = vector.broadcast %42 : vector<8x1xf32> to vector<8x4xf32>
    %44 = arith.cmpf ole, %35, %43 : vector<8x4xf32>
    %c1073741824_i32_13 = arith.constant 1073741824 : i32
    %45 = vector.broadcast %c1073741824_i32_13 : i32 to vector<8x4xi32>
    %46 = arith.select %44, %37, %45 : vector<8x4xi1>, vector<8x4xi32>
    %cst_14 = arith.constant dense<2147483647> : vector<8xi32>
    %47 = vector.multi_reduction <minsi>, %46, %cst_14 [1] : vector<8x4xi32> to vector<8xi32>
    %48 = vector.shape_cast %47 : vector<8xi32> to vector<8x1xi32>
    %cst_15 = arith.constant dense<0x7F800000> : vector<8xf32>
    %49 = vector.multi_reduction <minimumf>, %34, %cst_15 [1] : vector<8x128xf32> to vector<8xf32>
    %50 = vector.shape_cast %49 : vector<8xf32> to vector<8x1xf32>
    %51 = vector.broadcast %50 : vector<8x1xf32> to vector<8x128xf32>
    %52 = arith.cmpf ole, %34, %51 : vector<8x128xf32>
    %c1073741824_i32_16 = arith.constant 1073741824 : i32
    %53 = vector.broadcast %c1073741824_i32_16 : i32 to vector<8x128xi32>
    %54 = arith.select %52, %30, %53 : vector<8x128xi1>, vector<8x128xi32>
    %cst_17 = arith.constant dense<2147483647> : vector<8xi32>
    %55 = vector.multi_reduction <minsi>, %54, %cst_17 [1] : vector<8x128xi32> to vector<8xi32>
    %56 = vector.shape_cast %55 : vector<8xi32> to vector<8x1xi32>
    %57 = arith.cmpf ole, %42, %50 : vector<8x1xf32>
    %58 = arith.select %57, %42, %50 : vector<8x1xi1>, vector<8x1xf32>
    %59 = arith.select %57, %48, %56 : vector<8x1xi1>, vector<8x1xi32>
    %c0_i32_18 = arith.constant 0 : i32
    %60 = vector.broadcast %c0_i32_18 : i32 to vector<8x4xi32>
    %61 = arith.cmpi eq, %38, %60 : vector<8x4xi32>
    %62 = vector.shape_cast %58 : vector<8x1xf32> to vector<8x1xf32>
    %63 = vector.broadcast %62 : vector<8x1xf32> to vector<8x4xf32>
    %64 = arith.select %61, %63, %39 : vector<8x4xi1>, vector<8x4xf32>
    %c0_i32_19 = arith.constant 0 : i32
    %65 = vector.broadcast %c0_i32_19 : i32 to vector<8x4xi32>
    %66 = arith.cmpi eq, %38, %65 : vector<8x4xi32>
    %67 = vector.shape_cast %59 : vector<8x1xi32> to vector<8x1xi32>
    %68 = vector.broadcast %67 : vector<8x1xi32> to vector<8x4xi32>
    %69 = arith.select %66, %68, %40 : vector<8x4xi1>, vector<8x4xi32>
    %70 = vector.broadcast %48 : vector<8x1xi32> to vector<8x4xi32>
    %71 = arith.cmpi eq, %37, %70 : vector<8x4xi32>
    %72 = vector.broadcast %57 : vector<8x1xi1> to vector<8x4xi1>
    %73 = arith.andi %72, %71 : vector<8x4xi1>
    %cst_20 = arith.constant 0x7F800000 : f32
    %74 = vector.broadcast %cst_20 : f32 to vector<8x4xf32>
    %75 = arith.select %73, %74, %35 : vector<8x4xi1>, vector<8x4xf32>
    %cst_21 = arith.constant dense<true> : vector<8x1xi1>
    %76 = arith.xori %57, %cst_21 : vector<8x1xi1>
    %77 = vector.broadcast %56 : vector<8x1xi32> to vector<8x128xi32>
    %78 = arith.cmpi eq, %30, %77 : vector<8x128xi32>
    %79 = vector.broadcast %76 : vector<8x1xi1> to vector<8x128xi1>
    %80 = arith.andi %79, %78 : vector<8x128xi1>
    %cst_22 = arith.constant 0x7F800000 : f32
    %81 = vector.broadcast %cst_22 : f32 to vector<8x128xf32>
    %82 = arith.select %80, %81, %34 : vector<8x128xi1>, vector<8x128xf32>
    %cst_23 = arith.constant dense<0x7F800000> : vector<8xf32>
    %83 = vector.multi_reduction <minimumf>, %75, %cst_23 [1] : vector<8x4xf32> to vector<8xf32>
    %84 = vector.shape_cast %83 : vector<8xf32> to vector<8x1xf32>
    %85 = vector.broadcast %84 : vector<8x1xf32> to vector<8x4xf32>
    %86 = arith.cmpf ole, %75, %85 : vector<8x4xf32>
    %c1073741824_i32_24 = arith.constant 1073741824 : i32
    %87 = vector.broadcast %c1073741824_i32_24 : i32 to vector<8x4xi32>
    %88 = arith.select %86, %37, %87 : vector<8x4xi1>, vector<8x4xi32>
    %cst_25 = arith.constant dense<2147483647> : vector<8xi32>
    %89 = vector.multi_reduction <minsi>, %88, %cst_25 [1] : vector<8x4xi32> to vector<8xi32>
    %90 = vector.shape_cast %89 : vector<8xi32> to vector<8x1xi32>
    %cst_26 = arith.constant dense<0x7F800000> : vector<8xf32>
    %91 = vector.multi_reduction <minimumf>, %82, %cst_26 [1] : vector<8x128xf32> to vector<8xf32>
    %92 = vector.shape_cast %91 : vector<8xf32> to vector<8x1xf32>
    %93 = vector.broadcast %92 : vector<8x1xf32> to vector<8x128xf32>
    %94 = arith.cmpf ole, %82, %93 : vector<8x128xf32>
    %c1073741824_i32_27 = arith.constant 1073741824 : i32
    %95 = vector.broadcast %c1073741824_i32_27 : i32 to vector<8x128xi32>
    %96 = arith.select %94, %30, %95 : vector<8x128xi1>, vector<8x128xi32>
    %cst_28 = arith.constant dense<2147483647> : vector<8xi32>
    %97 = vector.multi_reduction <minsi>, %96, %cst_28 [1] : vector<8x128xi32> to vector<8xi32>
    %98 = vector.shape_cast %97 : vector<8xi32> to vector<8x1xi32>
    %99 = arith.cmpf ole, %84, %92 : vector<8x1xf32>
    %100 = arith.select %99, %84, %92 : vector<8x1xi1>, vector<8x1xf32>
    %101 = arith.select %99, %90, %98 : vector<8x1xi1>, vector<8x1xi32>
    %c1_i32 = arith.constant 1 : i32
    %102 = vector.broadcast %c1_i32 : i32 to vector<8x4xi32>
    %103 = arith.cmpi eq, %38, %102 : vector<8x4xi32>
    %104 = vector.shape_cast %100 : vector<8x1xf32> to vector<8x1xf32>
    %105 = vector.broadcast %104 : vector<8x1xf32> to vector<8x4xf32>
    %106 = arith.select %103, %105, %64 : vector<8x4xi1>, vector<8x4xf32>
    %c1_i32_29 = arith.constant 1 : i32
    %107 = vector.broadcast %c1_i32_29 : i32 to vector<8x4xi32>
    %108 = arith.cmpi eq, %38, %107 : vector<8x4xi32>
    %109 = vector.shape_cast %101 : vector<8x1xi32> to vector<8x1xi32>
    %110 = vector.broadcast %109 : vector<8x1xi32> to vector<8x4xi32>
    %111 = arith.select %108, %110, %69 : vector<8x4xi1>, vector<8x4xi32>
    %112 = vector.broadcast %90 : vector<8x1xi32> to vector<8x4xi32>
    %113 = arith.cmpi eq, %37, %112 : vector<8x4xi32>
    %114 = vector.broadcast %99 : vector<8x1xi1> to vector<8x4xi1>
    %115 = arith.andi %114, %113 : vector<8x4xi1>
    %cst_30 = arith.constant 0x7F800000 : f32
    %116 = vector.broadcast %cst_30 : f32 to vector<8x4xf32>
    %117 = arith.select %115, %116, %75 : vector<8x4xi1>, vector<8x4xf32>
    %cst_31 = arith.constant dense<true> : vector<8x1xi1>
    %118 = arith.xori %99, %cst_31 : vector<8x1xi1>
    %119 = vector.broadcast %98 : vector<8x1xi32> to vector<8x128xi32>
    %120 = arith.cmpi eq, %30, %119 : vector<8x128xi32>
    %121 = vector.broadcast %118 : vector<8x1xi1> to vector<8x128xi1>
    %122 = arith.andi %121, %120 : vector<8x128xi1>
    %cst_32 = arith.constant 0x7F800000 : f32
    %123 = vector.broadcast %cst_32 : f32 to vector<8x128xf32>
    %124 = arith.select %122, %123, %82 : vector<8x128xi1>, vector<8x128xf32>
    %cst_33 = arith.constant dense<0x7F800000> : vector<8xf32>
    %125 = vector.multi_reduction <minimumf>, %117, %cst_33 [1] : vector<8x4xf32> to vector<8xf32>
    %126 = vector.shape_cast %125 : vector<8xf32> to vector<8x1xf32>
    %127 = vector.broadcast %126 : vector<8x1xf32> to vector<8x4xf32>
    %128 = arith.cmpf ole, %117, %127 : vector<8x4xf32>
    %c1073741824_i32_34 = arith.constant 1073741824 : i32
    %129 = vector.broadcast %c1073741824_i32_34 : i32 to vector<8x4xi32>
    %130 = arith.select %128, %37, %129 : vector<8x4xi1>, vector<8x4xi32>
    %cst_35 = arith.constant dense<2147483647> : vector<8xi32>
    %131 = vector.multi_reduction <minsi>, %130, %cst_35 [1] : vector<8x4xi32> to vector<8xi32>
    %132 = vector.shape_cast %131 : vector<8xi32> to vector<8x1xi32>
    %cst_36 = arith.constant dense<0x7F800000> : vector<8xf32>
    %133 = vector.multi_reduction <minimumf>, %124, %cst_36 [1] : vector<8x128xf32> to vector<8xf32>
    %134 = vector.shape_cast %133 : vector<8xf32> to vector<8x1xf32>
    %135 = vector.broadcast %134 : vector<8x1xf32> to vector<8x128xf32>
    %136 = arith.cmpf ole, %124, %135 : vector<8x128xf32>
    %c1073741824_i32_37 = arith.constant 1073741824 : i32
    %137 = vector.broadcast %c1073741824_i32_37 : i32 to vector<8x128xi32>
    %138 = arith.select %136, %30, %137 : vector<8x128xi1>, vector<8x128xi32>
    %cst_38 = arith.constant dense<2147483647> : vector<8xi32>
    %139 = vector.multi_reduction <minsi>, %138, %cst_38 [1] : vector<8x128xi32> to vector<8xi32>
    %140 = vector.shape_cast %139 : vector<8xi32> to vector<8x1xi32>
    %141 = arith.cmpf ole, %126, %134 : vector<8x1xf32>
    %142 = arith.select %141, %126, %134 : vector<8x1xi1>, vector<8x1xf32>
    %143 = arith.select %141, %132, %140 : vector<8x1xi1>, vector<8x1xi32>
    %c2_i32 = arith.constant 2 : i32
    %144 = vector.broadcast %c2_i32 : i32 to vector<8x4xi32>
    %145 = arith.cmpi eq, %38, %144 : vector<8x4xi32>
    %146 = vector.shape_cast %142 : vector<8x1xf32> to vector<8x1xf32>
    %147 = vector.broadcast %146 : vector<8x1xf32> to vector<8x4xf32>
    %148 = arith.select %145, %147, %106 : vector<8x4xi1>, vector<8x4xf32>
    %c2_i32_39 = arith.constant 2 : i32
    %149 = vector.broadcast %c2_i32_39 : i32 to vector<8x4xi32>
    %150 = arith.cmpi eq, %38, %149 : vector<8x4xi32>
    %151 = vector.shape_cast %143 : vector<8x1xi32> to vector<8x1xi32>
    %152 = vector.broadcast %151 : vector<8x1xi32> to vector<8x4xi32>
    %153 = arith.select %150, %152, %111 : vector<8x4xi1>, vector<8x4xi32>
    %154 = vector.broadcast %132 : vector<8x1xi32> to vector<8x4xi32>
    %155 = arith.cmpi eq, %37, %154 : vector<8x4xi32>
    %156 = vector.broadcast %141 : vector<8x1xi1> to vector<8x4xi1>
    %157 = arith.andi %156, %155 : vector<8x4xi1>
    %cst_40 = arith.constant 0x7F800000 : f32
    %158 = vector.broadcast %cst_40 : f32 to vector<8x4xf32>
    %159 = arith.select %157, %158, %117 : vector<8x4xi1>, vector<8x4xf32>
    %cst_41 = arith.constant dense<true> : vector<8x1xi1>
    %160 = arith.xori %141, %cst_41 : vector<8x1xi1>
    %161 = vector.broadcast %140 : vector<8x1xi32> to vector<8x128xi32>
    %162 = arith.cmpi eq, %30, %161 : vector<8x128xi32>
    %163 = vector.broadcast %160 : vector<8x1xi1> to vector<8x128xi1>
    %164 = arith.andi %163, %162 : vector<8x128xi1>
    %cst_42 = arith.constant 0x7F800000 : f32
    %165 = vector.broadcast %cst_42 : f32 to vector<8x128xf32>
    %166 = arith.select %164, %165, %124 : vector<8x128xi1>, vector<8x128xf32>
    %cst_43 = arith.constant dense<0x7F800000> : vector<8xf32>
    %167 = vector.multi_reduction <minimumf>, %159, %cst_43 [1] : vector<8x4xf32> to vector<8xf32>
    %168 = vector.shape_cast %167 : vector<8xf32> to vector<8x1xf32>
    %169 = vector.broadcast %168 : vector<8x1xf32> to vector<8x4xf32>
    %170 = arith.cmpf ole, %159, %169 : vector<8x4xf32>
    %c1073741824_i32_44 = arith.constant 1073741824 : i32
    %171 = vector.broadcast %c1073741824_i32_44 : i32 to vector<8x4xi32>
    %172 = arith.select %170, %37, %171 : vector<8x4xi1>, vector<8x4xi32>
    %cst_45 = arith.constant dense<2147483647> : vector<8xi32>
    %173 = vector.multi_reduction <minsi>, %172, %cst_45 [1] : vector<8x4xi32> to vector<8xi32>
    %174 = vector.shape_cast %173 : vector<8xi32> to vector<8x1xi32>
    %cst_46 = arith.constant dense<0x7F800000> : vector<8xf32>
    %175 = vector.multi_reduction <minimumf>, %166, %cst_46 [1] : vector<8x128xf32> to vector<8xf32>
    %176 = vector.shape_cast %175 : vector<8xf32> to vector<8x1xf32>
    %177 = vector.broadcast %176 : vector<8x1xf32> to vector<8x128xf32>
    %178 = arith.cmpf ole, %166, %177 : vector<8x128xf32>
    %c1073741824_i32_47 = arith.constant 1073741824 : i32
    %179 = vector.broadcast %c1073741824_i32_47 : i32 to vector<8x128xi32>
    %180 = arith.select %178, %30, %179 : vector<8x128xi1>, vector<8x128xi32>
    %cst_48 = arith.constant dense<2147483647> : vector<8xi32>
    %181 = vector.multi_reduction <minsi>, %180, %cst_48 [1] : vector<8x128xi32> to vector<8xi32>
    %182 = vector.shape_cast %181 : vector<8xi32> to vector<8x1xi32>
    %183 = arith.cmpf ole, %168, %176 : vector<8x1xf32>
    %184 = arith.select %183, %168, %176 : vector<8x1xi1>, vector<8x1xf32>
    %185 = arith.select %183, %174, %182 : vector<8x1xi1>, vector<8x1xi32>
    %c3_i32 = arith.constant 3 : i32
    %186 = vector.broadcast %c3_i32 : i32 to vector<8x4xi32>
    %187 = arith.cmpi eq, %38, %186 : vector<8x4xi32>
    %188 = vector.shape_cast %184 : vector<8x1xf32> to vector<8x1xf32>
    %189 = vector.broadcast %188 : vector<8x1xf32> to vector<8x4xf32>
    %190 = arith.select %187, %189, %148 : vector<8x4xi1>, vector<8x4xf32>
    %c3_i32_49 = arith.constant 3 : i32
    %191 = vector.broadcast %c3_i32_49 : i32 to vector<8x4xi32>
    %192 = arith.cmpi eq, %38, %191 : vector<8x4xi32>
    %193 = vector.shape_cast %185 : vector<8x1xi32> to vector<8x1xi32>
    %194 = vector.broadcast %193 : vector<8x1xi32> to vector<8x4xi32>
    %195 = arith.select %192, %194, %153 : vector<8x4xi1>, vector<8x4xi32>
    %c0_50 = arith.constant 0 : index
    %c0_51 = arith.constant 0 : index
    %196 = vector.load %arg6[%c0_50, %c0_51] : memref<8x4xf32, #tpu.memory_space<vmem>>, vector<8x4xf32>
    tpu.vector_store %arg6[%c0_50, %c0_51], %190 {strides = array<i32>} : memref<8x4xf32, #tpu.memory_space<vmem>>, vector<8x4xf32>,
    %c0_52 = arith.constant 0 : index
    %c0_53 = arith.constant 0 : index
    %c0_54 = arith.constant 0 : index
    %197 = vector.load %arg5[%c0_52, %c0_53, %c0_54] : memref<1x8x4xi32, #tpu.memory_space<vmem>>, vector<1x8x4xi32>
    %198 = vector.shape_cast %197 : vector<1x8x4xi32> to vector<8x4xi32>
    %199 = vector.shape_cast %195 : vector<8x4xi32> to vector<1x8x4xi32>
    tpu.vector_store %arg5[%c0_52, %c0_53, %c0_54], %199 {strides = array<i32>} : memref<1x8x4xi32, #tpu.memory_space<vmem>>, vector<1x8x4xi32>,
    return
  }
  func.func @transform_0(%arg0: i32, %arg1: i32, %arg2: i32) -> (i32, i32, i32) {
    %c0_i32 = arith.constant 0 : i32
    %c0_i32_0 = arith.constant 0 : i32
    return %arg0, %arg1, %c0_i32 : i32, i32, i32
  }
  func.func @transform_1(%arg0: i32, %arg1: i32, %arg2: i32) -> (i32, i32, i32) {
    %c0_i32 = arith.constant 0 : i32
    %c0_i32_0 = arith.constant 0 : i32
    return %arg0, %c0_i32, %arg2 : i32, i32, i32
  }
  func.func @transform_2(%arg0: i32, %arg1: i32, %arg2: i32) -> (i32, i32, i32) {
    %c0_i32 = arith.constant 0 : i32
    %c0_i32_0 = arith.constant 0 : i32
    return %arg0, %arg1, %c0_i32 : i32, i32, i32
  }
}

</mosaic_0001>

<llo_original>
// kernel: tpu_custom_call.1
$region0: #{tpu_custom_call.1}
  #allocation0 [shape = 'u32[]', space=smem, size = 0x4, offset = 0x4, fixed_abs, tag = 'smem constant byte address 0x4 - core index']
  #allocation1 [shape = 'u32[144,128]{1,0:T(1,128)}', space=vmem, size = 0x12000, scoped, tag = 'internal scratch']
  #allocation2 [shape = 'f32[8,4]{1,0:T(8,128)}', space=vmem, size = 0x1000, scoped, tag = 'scratch operand']
  %s0 = inlined_call_operand.vmem [shape: f32[2,8,3], index: 0, kind: input, shape index: {}]
  %s1 = inlined_call_operand.vmem [shape: f32[2,3,128], index: 1, kind: input, shape index: {}]
  %s2 = inlined_call_operand.vmem [shape: s32[2,8,4], index: 2, kind: output, shape index: {}]
  %s3 = sld [smem:[#allocation0]]
  $region45: #{tpu_custom_call.1} parent=0
    _
  %s5 = ssub.s32 1, %s3
  %s6 = scalar_select 0, %s5, %s3
  loop: start=0, step=1, limit=4
  $region2: #{tpu_custom_call.1} parent=0 // loop_pre_header
    _
  $region3: #{tpu_custom_call.1} parent=0 // loop_header
    %s8 = sphi 0, %s12
    %p9 = scmp.ge.s32.totalorder %s8, 4
    %s15 = sphi 0, %s34
    %s16 = sphi 0, %s30
    %s17 = sphi 0, %s26
    %s18 = sphi 0, %s15
    %s19 = sphi 0, %s16
    %s20 = sphi 0, %s17
    %s21 = sphi 0, %s18
    %s22 = sphi 0, %s19
    %s23 = sphi 0, %s20
    %s39 = sphi 0, %s41
    %s42 = sphi 0, %s39
    %s43 = sphi 0, %s42
    %s59 = sphi 0, %s43
    %s67 = sphi 0, %s69
    %s70 = sphi 0, %s67
    %s71 = sphi 0, %s70
    %s87 = sphi 0, %s71
    %s95 = sphi 0, %s97
    %s98 = sphi 0, %s95
    %s99 = sphi 0, %s98
    %s115 = sphi 0, %s99
  $region4: #{tpu_custom_call.1} parent=0 // loop_header_branch
    %11 = sbr.rel (%p9) target = $region8
  $region5: #{tpu_custom_call.1} parent=0 // loop_body
    %s13 = ssub.s32 %s8, 1
    %s14 = ssub.s32 %s8, 2
    %s24 = sadd.s32 1, %s17
    %p25 = scmp.ge.s32.totalorder %s24, 1
    %s26 = scalar_select %p25, 0, %s24
    %s27 = sadd.s32 1, %s16
    %s28 = scalar_select %p25, %s27, %s16
    %p29 = scmp.ge.s32.totalorder %s28, 1
    %s30 = scalar_select %p29, 0, %s28
    %s31 = sadd.s32 1, %s15
    %s32 = scalar_select %p29, %s31, %s15
    %p33 = scmp.ge.s32.totalorder %s32, 2
    %s34 = scalar_select %p33, 0, %s32
    %s35 = ssub.s32 %s15, %s34
    %s36 = ssub.s32 %s16, %s30
    %s37 = sor.u32 %s35, %s36
    %p38 = scmp.eq.s32.totalorder %s37, 0
    %s40 = sadd.s32 %s39, 1
    %s41 = scalar_select %p38, %s39, %s40
    %p44 = pneg %p38
    %p45 = scmp.eq.s32.totalorder %s8, 1
    %p46 = por %p44, %p45
    %p47 = scmp.ne.s32.totalorder %s39, %s42
    %p48 = scmp.eq.s32.totalorder %s8, 0
    %p49 = por %p47, %p48
    %p50 = scmp.ne.s32.totalorder %s39, %s42
    %p51 = scmp.eq.s32.totalorder %s13, 1
    %p52 = por %p50, %p51
    %p53 = scmp.ne.s32.totalorder %s42, %s43
    %p54 = scmp.eq.s32.totalorder %s13, 0
    %p55 = por %p53, %p54
    %p56 = scmp.ne.s32.totalorder %s42, %s43
    %p57 = scmp.eq.s32.totalorder %s14, 1
    %p58 = por %p56, %p57
    %p60 = scmp.ne.s32.totalorder %s43, %s59
    %p61 = scmp.eq.s32.totalorder %s14, 0
    %p62 = por %p60, %p61
    %s63 = ssub.s32 %s15, %s34
    %s64 = ssub.s32 %s17, %s26
    %s65 = sor.u32 %s63, %s64
    %p66 = scmp.eq.s32.totalorder %s65, 0
    %s68 = sadd.s32 %s67, 1
    %s69 = scalar_select %p66, %s67, %s68
    %p72 = pneg %p66
    %p73 = scmp.eq.s32.totalorder %s8, 1
    %p74 = por %p72, %p73
    %p75 = scmp.ne.s32.totalorder %s67, %s70
    %p76 = scmp.eq.s32.totalorder %s8, 0
    %p77 = por %p75, %p76
    %p78 = scmp.ne.s32.totalorder %s67, %s70
    %p79 = scmp.eq.s32.totalorder %s13, 1
    %p80 = por %p78, %p79
    %p81 = scmp.ne.s32.totalorder %s70, %s71
    %p82 = scmp.eq.s32.totalorder %s13, 0
    %p83 = por %p81, %p82
    %p84 = scmp.ne.s32.totalorder %s70, %s71
    %p85 = scmp.eq.s32.totalorder %s14, 1
    %p86 = por %p84, %p85
    %p88 = scmp.ne.s32.totalorder %s71, %s87
    %p89 = scmp.eq.s32.totalorder %s14, 0
    %p90 = por %p88, %p89
    %s91 = ssub.s32 %s15, %s34
    %s92 = ssub.s32 %s16, %s30
    %s93 = sor.u32 %s91, %s92
    %p94 = scmp.eq.s32.totalorder %s93, 0
    %s96 = sadd.s32 %s95, 1
    %s97 = scalar_select %p94, %s95, %s96
    %p100 = pneg %p94
    %p101 = scmp.eq.s32.totalorder %s8, 1
    %p102 = por %p100, %p101
    %p103 = scmp.ne.s32.totalorder %s95, %s98
    %p104 = scmp.eq.s32.totalorder %s8, 0
    %p105 = por %p103, %p104
    %p106 = scmp.ne.s32.totalorder %s95, %s98
    %p107 = scmp.eq.s32.totalorder %s13, 1
    %p108 = por %p106, %p107
    %p109 = scmp.ne.s32.totalorder %s98, %s99
    %p110 = scmp.eq.s32.totalorder %s13, 0
    %p111 = por %p109, %p110
    %p112 = scmp.ne.s32.totalorder %s98, %s99
    %p113 = scmp.eq.s32.totalorder %s14, 1
    %p114 = por %p112, %p113
    %p116 = scmp.ne.s32.totalorder %s99, %s115
    %p117 = scmp.eq.s32.totalorder %s14, 0
    %p118 = por %p116, %p117
    %p119 = scmp.le.s32.totalorder 1, %s8
    %p120 = scmp.lt.s32.totalorder %s8, 3
    %p121 = pnand %p119, %p120
    %p122 = pneg %p121
    // Predicated region
    $region9: #{tpu_custom_call.1} parent=5 // pred_check
      _
    $region10: #{tpu_custom_call.1} parent=5 // pred_check_branch
      %124 = sbr.rel (%p121) target = $region12
    $region11: #{tpu_custom_call.1} parent=5 // pred_region
      %s125 = ssub.s32 %s8, 1
    $region12: #{tpu_custom_call.1} parent=5 // pred_fallthru
      _
    %p126 = scmp.lt.s32.totalorder %s8, 2
    // Predicated region
    $region13: #{tpu_custom_call.1} parent=5 // pred_check
      %p127 = pneg %p126
    $region14: #{tpu_custom_call.1} parent=5 // pred_check_branch
      %129 = sbr.rel (%p127) target = $region16
    $region15: #{tpu_custom_call.1} parent=5 // pred_region
      // Predicated region
      $region17: #{tpu_custom_call.1} parent=15 // pred_check
        %p130 = pneg %p49
      $region18: #{tpu_custom_call.1} parent=15 // pred_check_branch
        %132 = sbr.rel (%p130) target = $region20
      $region19: #{tpu_custom_call.1} parent=15 // pred_region
        %p133 = scmp.lt.s32.totalorder %s15, 1
        %s134 = scalar_select %p133, %s15, 1
        %p135 = scmp.lt.s32.totalorder %s16, 0
        %s136 = scalar_select %p135, %s16, 0
        %s137 = sadd.s32 %s136, %s134
        %s138 = smul.addr %s137, 8
        %s139 = scalar_lea.vmem %s0, %s138
      $region20: #{tpu_custom_call.1} parent=15 // pred_fallthru
        _
      // Predicated region
      $region21: #{tpu_custom_call.1} parent=15 // pred_check
        %p140 = pneg %p77
      $region22: #{tpu_custom_call.1} parent=15 // pred_check_branch
        %142 = sbr.rel (%p140) target = $region24
      $region23: #{tpu_custom_call.1} parent=15 // pred_region
        %p143 = scmp.lt.s32.totalorder %s15, 1
        %s144 = scalar_select %p143, %s15, 1
        %p145 = scmp.lt.s32.totalorder %s17, 0
        %s146 = scalar_select %p145, %s17, 0
        %s147 = sadd.s32 %s146, %s144
        %s148 = smul.addr %s147, 4
        %s149 = scalar_lea.vmem %s1, %s148
      $region24: #{tpu_custom_call.1} parent=15 // pred_fallthru
        _
    $region16: #{tpu_custom_call.1} parent=5 // pred_fallthru
      _
    %p150 = scmp.le.s32.totalorder 1, %s8
    %p151 = scmp.lt.s32.totalorder %s8, 3
    %p152 = pnand %p150, %p151
    %p153 = pneg %p152
    // Predicated region
    $region25: #{tpu_custom_call.1} parent=5 // pred_check
      _
    $region26: #{tpu_custom_call.1} parent=5 // pred_check_branch
      %155 = sbr.rel (%p152) target = $region28
    $region27: #{tpu_custom_call.1} parent=5 // pred_region
      %s156 = ssub.s32 %s8, 1
      %p157 = scmp.lt.s32.totalorder %s18, 1
      %s158 = scalar_select %p157, %s18, 1
      %p159 = scmp.lt.s32.totalorder %s19, 0
      %s160 = scalar_select %p159, %s19, 0
      %s161 = sadd.s32 %s160, %s158
      %s162 = smul.addr %s161, 8
      %s163 = scalar_lea.vmem %s0, %s162
      %p164 = pneg %p55
      %p165 = pneg %p52
      %p166 = scmp.lt.s32.totalorder %s18, 1
      %s167 = scalar_select %p166, %s18, 1
      %p168 = scmp.lt.s32.totalorder %s20, 0
      %s169 = scalar_select %p168, %s20, 0
      %s170 = sadd.s32 %s169, %s167
      %s171 = smul.addr %s170, 4
      %s172 = scalar_lea.vmem %s1, %s171
      %p173 = pneg %p83
      %p174 = pneg %p80
      %p175 = pneg %p111
      %p176 = pneg %p108
      %p177 = scmp.lt.s32.totalorder %s18, 1
      %s178 = scalar_select %p177, %s18, 1
      %p179 = scmp.lt.s32.totalorder %s19, 0
      %s180 = scalar_select %p179, %s19, 0
      %s181 = sadd.s32 %s180, %s178
      %s182 = smul.addr %s181, 8
      %s183 = scalar_lea.vmem %s2, %s182
      %p184 = scmp.lt.s32.totalorder %s18, 1
      %s185 = scalar_select %p184, %s18, 1
      %p186 = scmp.lt.s32.totalorder %s19, 0
      %s187 = scalar_select %p186, %s19, 0
      %s188 = sadd.s32 %s187, %s185
      %s189 = smul.addr %s188, 8
      %s190 = scalar_lea.vmem %s0, %s189
      %p191 = scmp.lt.s32.totalorder %s18, 1
      %s192 = scalar_select %p191, %s18, 1
      %p193 = scmp.lt.s32.totalorder %s20, 0
      %s194 = scalar_select %p193, %s20, 0
      %s195 = sadd.s32 %s194, %s192
      %s196 = smul.addr %s195, 4
      %s197 = scalar_lea.vmem %s1, %s196
      %p198 = scmp.lt.s32.totalorder %s18, 1
      %s199 = scalar_select %p198, %s18, 1
      %p200 = scmp.lt.s32.totalorder %s19, 0
      %s201 = scalar_select %p200, %s19, 0
      %s202 = sadd.s32 %s201, %s199
      %s203 = smul.addr %s202, 8
      %s204 = scalar_lea.vmem %s2, %s203
      %p205 = scmp.eq.s32.totalorder %s20, 0
      // Predicated region
      $region29: #{tpu_custom_call.1} parent=27 // pred_check
        %p206 = pneg %p205
      $region30: #{tpu_custom_call.1} parent=27 // pred_check_branch
        %208 = sbr.rel (%p206) target = $region32
      $region31: #{tpu_custom_call.1} parent=27 // pred_region
        %vm209 = vcmask 31744
        %210 = vst.msk [vmem:[#allocation2] sm:$0xff] %vm209, inf
        %211 = vst.msk [vmem:[%s204] sm:$0xff] %vm209, 1073741824
      $region32: #{tpu_custom_call.1} parent=27 // pred_fallthru
        _
      %v212 = vld [vmem:[%s190] sm:$0xff]
      %v213 = vld [vmem:[%s197] sm:$0x7]
      %215 = vset.pattern.permute.xlu0 0
      %216 = vperm.xlu0 %215, %v212
      %v217 = vpop.permute.xlu0 %216
      %v219 = vlaneseq
      %v220 = vshrl.u32 %v219, 7
      %v221 = vsub.s32 0, %v220
      %v222 = vrot.slane %v213, %v221
      %v223 = vsub.f32 %v217, %v222
      %224 = vset.pattern.permute.xlu0 1
      %225 = vperm.xlu0 %224, %v212
      %v226 = vpop.permute.xlu0 %225
      %v228 = vlaneseq
      %v229 = vshrl.u32 %v228, 7
      %v230 = vsub.s32 1, %v229
      %v231 = vrot.slane %v213, %v230
      %v232 = vsub.f32 %v226, %v231
      %233 = vset.pattern.permute.xlu0 2
      %234 = vperm.xlu0 %233, %v212
      %v235 = vpop.permute.xlu0 %234
      %v237 = vlaneseq
      %v238 = vshrl.u32 %v237, 7
      %v239 = vsub.s32 2, %v238
      %v240 = vrot.slane %v213, %v239
      %v241 = vsub.f32 %v235, %v240
      %v242 = vmul.f32 %v223, %v223
      %v243 = vmul.f32 %v232, %v232
      %v244 = vadd.f32 %v242, %v243
      %v245 = vmul.f32 %v241, %v241
      %v246 = vadd.f32 %v244, %v245
      %v247 = vlaneseq
      %v248 = vand.u32 %v247, 127
      %s249 = smul.u32 %s20, 128
      %v250 = vstv %s249
      %v251 = vadd.s32 %v248, %v250
      %vm252 = vcmp.lt.s32.totalorder %v251, 16
      %v253 = vsel %vm252, %v246, inf
      %v254 = vld [vmem:[#allocation2] sm:$0xff]
      %v255 = vld [vmem:[%s204] sm:$0xff]
      %vm256 = vcmask 31744
      %v257 = vsel %vm256, %v254, inf
      %258 = vmin.xlane.f32.xlu0 %v257
      %v259 = vpop.xlane.xlu0 %258
      %vm260 = vcmp.le.f32.partialorder %v254, %v259
      %v261 = vsel %vm260, %v255, 1073741824
      %v262 = vsel %vm256, %v261, 2147483647
      %v263 = vand.u32 %v262, 65535
      %v264 = vshra.s32 %v262, 16
      %v265 = vcvt.s32.f32 %v263
      %v266 = vcvt.s32.f32 %v264
      %267 = vmin.xlane.f32.xlu0 %v266
      %v268 = vpop.xlane.xlu0 %267
      %vm269 = vcmp.eq.f32.partialorder %v266, %v268
      %v270 = vsel %vm269, %v265, inf
      %271 = vmin.xlane.f32.xlu0 %v270
      %v272 = vpop.xlane.xlu0 %271
      %v273 = vcvt.f32.s32 %v272
      %v274 = vcvt.f32.s32 %v268
      %v275 = vshll.u32 %v274, 16
      %v276 = vadd.s32 %v275, %v273
      %277 = vmin.xlane.f32.xlu0 %v253
      %v278 = vpop.xlane.xlu0 %277
      %vm279 = vcmp.le.f32.partialorder %v253, %v278
      %v280 = vsel %vm279, %v251, 1073741824
      %v281 = vand.u32 %v280, 65535
      %v282 = vshra.s32 %v280, 16
      %v283 = vcvt.s32.f32 %v281
      %v284 = vcvt.s32.f32 %v282
      %285 = vmin.xlane.f32.xlu0 %v284
      %v286 = vpop.xlane.xlu0 %285
      %vm287 = vcmp.eq.f32.partialorder %v284, %v286
      %v288 = vsel %vm287, %v283, inf
      %289 = vmin.xlane.f32.xlu0 %v288
      %v290 = vpop.xlane.xlu0 %289
      %v291 = vcvt.f32.s32 %v290
      %v292 = vcvt.f32.s32 %v286
      %v293 = vshll.u32 %v292, 16
      %v294 = vadd.s32 %v293, %v291
      %vm295 = vcmp.le.f32.partialorder %v259, %v278
      %v296 = vsel %vm295, %v259, %v278
      %v297 = vsel %vm295, %v276, %v294
      %vm298 = vcmp.eq.s32.totalorder %v248, 0
      %v299 = vsel %vm298, %v296, inf
      %v300 = vsel %vm298, %v297, 1073741824
      %vm301 = vcmp.eq.s32.totalorder %v255, %v276
      %v302 = vsel %vm295, 1, 0
      %vm303 = vcmp.eq.s32.totalorder %v302, 1
      %vm304 = vmand %vm303, %vm301
      %v305 = vsel %vm304, inf, %v254
      %vm306 = vmxor %vm295, 1
      %vm307 = vcmp.eq.s32.totalorder %v251, %v294
      %v308 = vsel %vm306, 1, 0
      %vm309 = vcmp.eq.s32.totalorder %v308, 1
      %vm310 = vmand %vm309, %vm307
      %v311 = vsel %vm310, inf, %v253
      %v312 = vsel %vm256, %v305, inf
      %313 = vmin.xlane.f32.xlu0 %v312
      %v314 = vpop.xlane.xlu0 %313
      %vm315 = vcmp.le.f32.partialorder %v305, %v314
      %v316 = vsel %vm315, %v255, 1073741824
      %v317 = vsel %vm256, %v316, 2147483647
      %v318 = vand.u32 %v317, 65535
      %v319 = vshra.s32 %v317, 16
      %v320 = vcvt.s32.f32 %v318
      %v321 = vcvt.s32.f32 %v319
      %322 = vmin.xlane.f32.xlu0 %v321
      %v323 = vpop.xlane.xlu0 %322
      %vm324 = vcmp.eq.f32.partialorder %v321, %v323
      %v325 = vsel %vm324, %v320, inf
      %326 = vmin.xlane.f32.xlu0 %v325
      %v327 = vpop.xlane.xlu0 %326
      %v328 = vcvt.f32.s32 %v327
      %v329 = vcvt.f32.s32 %v323
      %v330 = vshll.u32 %v329, 16
      %v331 = vadd.s32 %v330, %v328
      %332 = vmin.xlane.f32.xlu0 %v311
      %v333 = vpop.xlane.xlu0 %332
      %vm334 = vcmp.le.f32.partialorder %v311, %v333
      %v335 = vsel %vm334, %v251, 1073741824
      %v336 = vand.u32 %v335, 65535
      %v337 = vshra.s32 %v335, 16
      %v338 = vcvt.s32.f32 %v336
      %v339 = vcvt.s32.f32 %v337
      %340 = vmin.xlane.f32.xlu0 %v339
      %v341 = vpop.xlane.xlu0 %340
      %vm342 = vcmp.eq.f32.partialorder %v339, %v341
      %v343 = vsel %vm342, %v338, inf
      %344 = vmin.xlane.f32.xlu0 %v343
      %v345 = vpop.xlane.xlu0 %344
      %v346 = vcvt.f32.s32 %v345
      %v347 = vcvt.f32.s32 %v341
      %v348 = vshll.u32 %v347, 16
      %v349 = vadd.s32 %v348, %v346
      %vm350 = vcmp.le.f32.partialorder %v314, %v333
      %v351 = vsel %vm350, %v314, %v333
      %v352 = vsel %vm350, %v331, %v349
      %vm353 = vcmp.eq.s32.totalorder %v248, 1
      %v354 = vsel %vm353, %v351, %v299
      %v355 = vsel %vm353, %v352, %v300
      %vm356 = vcmp.eq.s32.totalorder %v255, %v331
      %v357 = vsel %vm350, 1, 0
      %vm358 = vcmp.eq.s32.totalorder %v357, 1
      %vm359 = vmand %vm358, %vm356
      %v360 = vsel %vm359, inf, %v305
      %vm361 = vmxor %vm350, 1
      %vm362 = vcmp.eq.s32.totalorder %v251, %v349
      %v363 = vsel %vm361, 1, 0
      %vm364 = vcmp.eq.s32.totalorder %v363, 1
      %vm365 = vmand %vm364, %vm362
      %v366 = vsel %vm365, inf, %v311
      %v367 = vsel %vm256, %v360, inf
      %368 = vmin.xlane.f32.xlu0 %v367
      %v369 = vpop.xlane.xlu0 %368
      %vm370 = vcmp.le.f32.partialorder %v360, %v369
      %v371 = vsel %vm370, %v255, 1073741824
      %v372 = vsel %vm256, %v371, 2147483647
      %v373 = vand.u32 %v372, 65535
      %v374 = vshra.s32 %v372, 16
      %v375 = vcvt.s32.f32 %v373
      %v376 = vcvt.s32.f32 %v374
      %377 = vmin.xlane.f32.xlu0 %v376
      %v378 = vpop.xlane.xlu0 %377
      %vm379 = vcmp.eq.f32.partialorder %v376, %v378
      %v380 = vsel %vm379, %v375, inf
      %381 = vmin.xlane.f32.xlu0 %v380
      %v382 = vpop.xlane.xlu0 %381
      %v383 = vcvt.f32.s32 %v382
      %v384 = vcvt.f32.s32 %v378
      %v385 = vshll.u32 %v384, 16
      %v386 = vadd.s32 %v385, %v383
      %387 = vmin.xlane.f32.xlu0 %v366
      %v388 = vpop.xlane.xlu0 %387
      %vm389 = vcmp.le.f32.partialorder %v366, %v388
      %v390 = vsel %vm389, %v251, 1073741824
      %v391 = vand.u32 %v390, 65535
      %v392 = vshra.s32 %v390, 16
      %v393 = vcvt.s32.f32 %v391
      %v394 = vcvt.s32.f32 %v392
      %395 = vmin.xlane.f32.xlu0 %v394
      %v396 = vpop.xlane.xlu0 %395
      %vm397 = vcmp.eq.f32.partialorder %v394, %v396
      %v398 = vsel %vm397, %v393, inf
      %399 = vmin.xlane.f32.xlu0 %v398
      %v400 = vpop.xlane.xlu0 %399
      %v401 = vcvt.f32.s32 %v400
      %v402 = vcvt.f32.s32 %v396
      %v403 = vshll.u32 %v402, 16
      %v404 = vadd.s32 %v403, %v401
      %vm405 = vcmp.le.f32.partialorder %v369, %v388
      %v406 = vsel %vm405, %v369, %v388
      %v407 = vsel %vm405, %v386, %v404
      %vm408 = vcmp.eq.s32.totalorder %v248, 2
      %v409 = vsel %vm408, %v406, %v354
      %v410 = vsel %vm408, %v407, %v355
      %vm411 = vcmp.eq.s32.totalorder %v255, %v386
      %v412 = vsel %vm405, 1, 0
      %vm413 = vcmp.eq.s32.totalorder %v412, 1
      %vm414 = vmand %vm413, %vm411
      %v415 = vsel %vm414, inf, %v360
      %vm416 = vmxor %vm405, 1
      %vm417 = vcmp.eq.s32.totalorder %v251, %v404
      %v418 = vsel %vm416, 1, 0
      %vm419 = vcmp.eq.s32.totalorder %v418, 1
      %vm420 = vmand %vm419, %vm417
      %v421 = vsel %vm420, inf, %v366
      %v422 = vsel %vm256, %v415, inf
      %423 = vmin.xlane.f32.xlu0 %v422
      %v424 = vpop.xlane.xlu0 %423
      %vm425 = vcmp.le.f32.partialorder %v415, %v424
      %v426 = vsel %vm425, %v255, 1073741824
      %v427 = vsel %vm256, %v426, 2147483647
      %v428 = vand.u32 %v427, 65535
      %v429 = vshra.s32 %v427, 16
      %v430 = vcvt.s32.f32 %v428
      %v431 = vcvt.s32.f32 %v429
      %432 = vmin.xlane.f32.xlu0 %v431
      %v433 = vpop.xlane.xlu0 %432
      %vm434 = vcmp.eq.f32.partialorder %v431, %v433
      %v435 = vsel %vm434, %v430, inf
      %436 = vmin.xlane.f32.xlu0 %v435
      %v437 = vpop.xlane.xlu0 %436
      %v438 = vcvt.f32.s32 %v437
      %v439 = vcvt.f32.s32 %v433
      %v440 = vshll.u32 %v439, 16
      %v441 = vadd.s32 %v440, %v438
      %442 = vmin.xlane.f32.xlu0 %v421
      %v443 = vpop.xlane.xlu0 %442
      %vm444 = vcmp.le.f32.partialorder %v421, %v443
      %v445 = vsel %vm444, %v251, 1073741824
      %v446 = vand.u32 %v445, 65535
      %v447 = vshra.s32 %v445, 16
      %v448 = vcvt.s32.f32 %v446
      %v449 = vcvt.s32.f32 %v447
      %450 = vmin.xlane.f32.xlu0 %v449
      %v451 = vpop.xlane.xlu0 %450
      %vm452 = vcmp.eq.f32.partialorder %v449, %v451
      %v453 = vsel %vm452, %v448, inf
      %454 = vmin.xlane.f32.xlu0 %v453
      %v455 = vpop.xlane.xlu0 %454
      %v456 = vcvt.f32.s32 %v455
      %v457 = vcvt.f32.s32 %v451
      %v458 = vshll.u32 %v457, 16
      %v459 = vadd.s32 %v458, %v456
      %vm460 = vcmp.le.f32.partialorder %v424, %v443
      %v461 = vsel %vm460, %v424, %v443
      %v462 = vsel %vm460, %v441, %v459
      %vm463 = vcmp.eq.s32.totalorder %v248, 3
      %v464 = vsel %vm463, %v461, %v409
      %v465 = vsel %vm463, %v462, %v410
      %466 = vst.msk [vmem:[#allocation2] sm:$0xff] %vm256, %v464
      %467 = vst.msk [vmem:[%s204] sm:$0xff] %vm256, %v465
      %p468 = scmp.lt.s32.totalorder %s18, 1
      %s469 = scalar_select %p468, %s18, 1
      %p470 = scmp.lt.s32.totalorder %s19, 0
      %s471 = scalar_select %p470, %s19, 0
      %s472 = sadd.s32 %s471, %s469
      %s473 = smul.addr %s472, 8
      %s474 = scalar_lea.vmem %s2, %s473
      // Predicated region
      $region33: #{tpu_custom_call.1} parent=27 // pred_check
        %p475 = pneg %p108
      $region34: #{tpu_custom_call.1} parent=27 // pred_check_branch
        %477 = sbr.rel (%p475) target = $region36
      $region35: #{tpu_custom_call.1} parent=27 // pred_region
        _
      $region36: #{tpu_custom_call.1} parent=27 // pred_fallthru
        _
    $region28: #{tpu_custom_call.1} parent=5 // pred_fallthru
      _
    %p478 = scmp.le.s32.totalorder 2, %s8
    // Predicated region
    $region37: #{tpu_custom_call.1} parent=5 // pred_check
      %p479 = pneg %p478
    $region38: #{tpu_custom_call.1} parent=5 // pred_check_branch
      %481 = sbr.rel (%p479) target = $region40
    $region39: #{tpu_custom_call.1} parent=5 // pred_region
      %s482 = ssub.s32 %s8, 2
      // Predicated region
      $region41: #{tpu_custom_call.1} parent=39 // pred_check
        %p483 = pneg %p114
      $region42: #{tpu_custom_call.1} parent=39 // pred_check_branch
        %485 = sbr.rel (%p483) target = $region44
      $region43: #{tpu_custom_call.1} parent=39 // pred_region
        %p486 = scmp.lt.s32.totalorder %s21, 1
        %s487 = scalar_select %p486, %s21, 1
        %p488 = scmp.lt.s32.totalorder %s22, 0
        %s489 = scalar_select %p488, %s22, 0
        %s490 = sadd.s32 %s489, %s487
        %s491 = smul.addr %s490, 8
        %s492 = scalar_lea.vmem %s2, %s491
      $region44: #{tpu_custom_call.1} parent=39 // pred_fallthru
        _
    $region40: #{tpu_custom_call.1} parent=5 // pred_fallthru
      _
  $region6: #{tpu_custom_call.1} parent=0 // loop_footer
    %s12 = sadd.s32 1, %s8
  $region7: #{tpu_custom_call.1} parent=0 // loop_footer_branch
    %7 = sbr.rel target = $region3
  $region8: #{tpu_custom_call.1} parent=0 // loop_exit
    _

</llo_original>
